<compile_context>
chip_gen: v5e
topology: v5e:2x2
jax: 0.10.0
libtpu: 0.0.40
codegen_flags: <defaults>
</compile_context>

<pallas_src>
import functools

import numpy as np
import jax
import jax.numpy as jnp
from jax import lax
from jax.experimental import pallas as pl
from jax.experimental.pallas import tpu as pltpu


def _pair(v):
    return (v, v) if isinstance(v, int) else tuple(v)


def _round_up(x, m):
    return ((x + m - 1) // m) * m


_PAD_MODE = {"zero": "constant", "reflect": "reflect", "replicate": "edge"}

_SELU_ALPHA = 1.6732632423543772
_SELU_SCALE = 1.0507009873554805


def _apply_activation(y, act, act_param):
    if act == "relu":
        return jnp.maximum(y, 0.0)
    if act in ("lrelu", "prelu"):
        return jnp.where(y >= 0.0, y, act_param * y)
    if act == "selu":
        return _SELU_SCALE * jnp.where(y >= 0.0, y, _SELU_ALPHA * (jnp.exp(y) - 1.0))
    if act == "tanh":
        return jnp.tanh(y)
    if act == "none":
        return y
    raise ValueError(f"unsupported activation: {act}")


# --------------------------------------------------------------------------
# Pallas kernel: tiled (M, K) @ (K, N) + bias -> activation
# --------------------------------------------------------------------------

def _matmul_bias_act_kernel(x_ref, w_ref, b_ref, o_ref, acc_ref, *, act, act_param):
    """Grid = (M_tiles, N_tiles, K_tiles); K is the reduction axis (last, "arbitrary").

    x_ref: (TM, TK)  lane-dense im2col rows
    w_ref: (TK, TN)  lane-dense folded conv weight
    b_ref: (1,  TN)  f32 bias
    o_ref: (TM, TN)  f32 output tile
    acc_ref: VMEM (TM, TN) f32 accumulator (output-resident across the K axis)
    """
    k = pl.program_id(2)

    @pl.when(k == 0)
    def _():
        acc_ref[...] = jnp.zeros_like(acc_ref)

    acc_ref[...] += jnp.dot(x_ref[...], w_ref[...], preferred_element_type=jnp.float32)

    @pl.when(k == pl.num_programs(2) - 1)
    def _():
        y = acc_ref[...] + b_ref[...]
        y = _apply_activation(y, act, act_param)
        o_ref[...] = y.astype(o_ref.dtype)


# --------------------------------------------------------------------------
# Wrapper (NCHW in / NCHW out, mirrors Conv2dBlock.forward)
# --------------------------------------------------------------------------

def conv2d_block(x_nchw, weight, bias, *, kernel_size, stride, padding=0,
                 activation="relu", pad_type="zero", act_param=None,
                 compute_dtype=jnp.bfloat16):
    """x_nchw: (B, Cin, H, W); weight: (Cout, Cin, kh, kw); bias: (Cout,)."""
    kh, kw = _pair(kernel_size)
    sh, sw = _pair(stride)
    ph, pw = _pair(padding)
    if act_param is None:
        act_param = 0.2 if activation == "lrelu" else 0.25   # LeakyReLU(0.2) / PReLU default

    B, Cin, H, W = x_nchw.shape
    Cout = weight.shape[0]

    # ---- padding layer (ZeroPad2d / ReflectionPad2d / ReplicationPad2d) + NHWC ----
    x = jnp.transpose(x_nchw, (0, 2, 3, 1))
    xpad = jnp.pad(x, ((0, 0), (ph, ph), (pw, pw), (0, 0)), mode=_PAD_MODE[pad_type])
    Hp, Wp = H + 2 * ph, W + 2 * pw
    Ho = (Hp - kh) // sh + 1
    Wo = (Wp - kw) // sw + 1

    # ---- host-side im2col (stride handled here, NOT inside the kernel) ----
    # Column order is [dy][dx][cin], matching the weight flatten below.
    patches = []
    for dy in range(kh):
        for dx in range(kw):
            patches.append(
                xpad[:, dy:dy + sh * (Ho - 1) + 1:sh, dx:dx + sw * (Wo - 1) + 1:sw, :])
    K = kh * kw * Cin
    M = B * Ho * Wo
    xcol = jnp.concatenate(patches, axis=-1).reshape(M, K).astype(compute_dtype)

    # ---- lane-dense, MXU-friendly tiling ----
    TM = min(256, _round_up(M, 16))          # 16: bf16 sublane packing
    M_pad = _round_up(M, TM)
    K_pad = _round_up(K, 128)                # lane-dense LHS rows / RHS sublanes
    if K_pad % 512 == 0:
        TK = 512
    elif K_pad % 256 == 0:
        TK = 256
    else:
        TK = 128
    N_pad = _round_up(Cout, 128)             # lane-dense (unmasked) output stores
    TN = 256 if N_pad % 256 == 0 else 128

    xcol = jnp.pad(xcol, ((0, M_pad - M), (0, K_pad - K)))
    # (Cout, Cin, kh, kw) -> (kh, kw, Cin, Cout) -> (K, Cout); pad once (grid-invariant).
    w2 = jnp.transpose(weight, (2, 3, 1, 0)).reshape(K, Cout).astype(compute_dtype)
    w2 = jnp.pad(w2, ((0, K_pad - K), (0, N_pad - Cout)))
    b2 = jnp.pad(bias.astype(jnp.float32).reshape(1, Cout), ((0, 0), (0, N_pad - Cout)))

    grid = (M_pad // TM, N_pad // TN, K_pad // TK)

    # Explicit scoped-VMEM budget from the tile sizes (double-buffered ins/outs + acc).
    itm = jnp.dtype(compute_dtype).itemsize
    vmem_est = (2 * (TM * TK + TK * TN) * itm      # x, w (double-buffered)
                + 2 * TN * 4                       # bias
                + 2 * TM * TN * 4                  # output (double-buffered)
                + TM * TN * 4)                     # accumulator scratch
    vmem_limit = int(min(64 * 1024 * 1024, max(32 * 1024 * 1024, 2 * vmem_est)))

    out = pl.pallas_call(
        functools.partial(_matmul_bias_act_kernel,
                          act=activation, act_param=float(act_param)),
        out_shape=jax.ShapeDtypeStruct((M_pad, N_pad), jnp.float32),
        grid_spec=pltpu.PrefetchScalarGridSpec(
            num_scalar_prefetch=0,
            grid=grid,
            in_specs=[
                pl.BlockSpec((TM, TK), lambda i, j, k: (i, k)),
                pl.BlockSpec((TK, TN), lambda i, j, k: (k, j)),
                pl.BlockSpec((1, TN), lambda i, j, k: (0, j)),
            ],
            out_specs=pl.BlockSpec((TM, TN), lambda i, j, k: (i, j)),
            scratch_shapes=[pltpu.VMEM((TM, TN), jnp.float32)],
        ),
        compiler_params=pltpu.CompilerParams(
            dimension_semantics=("parallel", "parallel", "arbitrary"),
            vmem_limit_bytes=vmem_limit,
        ),
    )(xcol, w2, b2)

    # Un-pad, restore NCHW.  The slice fuses with the final transpose in XLA.
    y = out[:M, :Cout].reshape(B, Ho, Wo, Cout)
    return jnp.transpose(y, (0, 3, 1, 2))


# --------------------------------------------------------------------------
# Pure-JAX reference (correctness check only)
# --------------------------------------------------------------------------

def conv2d_block_ref(x_nchw, weight, bias, *, kernel_size, stride, padding=0,
                     activation="relu", pad_type="zero", act_param=None):
    kh, kw = _pair(kernel_size)
    sh, sw = _pair(stride)
    ph, pw = _pair(padding)
    if act_param is None:
        act_param = 0.2 if activation == "lrelu" else 0.25
    xpad = jnp.pad(x_nchw.astype(jnp.float32),
                   ((0, 0), (0, 0), (ph, ph), (pw, pw)), mode=_PAD_MODE[pad_type])
    y = lax.conv_general_dilated(
        xpad, weight.astype(jnp.float32), window_strides=(sh, sw), padding="VALID",
        dimension_numbers=("NCHW", "OIHW", "NCHW"), precision=lax.Precision.HIGHEST)
    y = y + bias.reshape(1, -1, 1, 1)
    return _apply_activation(y, activation, float(act_param))


# --------------------------------------------------------------------------

if __name__ == "__main__":
    key = jax.random.PRNGKey(0)
    kx, kw_, kb = jax.random.split(key, 3)

    B, Cin, H, W = 2, 4, 16, 16
    Cout, ksz, pad = 32, 3, 1

    x = jax.random.normal(kx, (B, Cin, H, W), jnp.float32)
    fan_in = Cin * ksz * ksz
    weight = jax.random.normal(kw_, (Cout, Cin, ksz, ksz), jnp.float32) * np.sqrt(2.0 / fan_in)
    bound = 1.0 / np.sqrt(fan_in)
    bias = jax.random.uniform(kb, (Cout,), jnp.float32, minval=-bound, maxval=bound)

    # 1) Default Conv2dBlock config: zero padding, ReLU, f32 MXU operands.
    y = conv2d_block(x, weight, bias, kernel_size=ksz, stride=1, padding=pad,
                     activation="relu", pad_type="zero", compute_dtype=jnp.float32)
    y = jax.block_until_ready(y)
    assert y.shape == (B, Cout, H, W), y.shape
    y_ref = conv2d_block_ref(x, weight, bias, kernel_size=ksz, stride=1, padding=pad,
                             activation="relu", pad_type="zero")
    np.testing.assert_allclose(np.asarray(y), np.asarray(y_ref), rtol=1e-2, atol=1e-2)

    # 2) tanh activation + reflection padding (f32).
    y2 = conv2d_block(x, weight, bias, kernel_size=ksz, stride=1, padding=pad,
                      activation="tanh", pad_type="reflect", compute_dtype=jnp.float32)
    y2 = jax.block_until_ready(y2)
    y2_ref = conv2d_block_ref(x, weight, bias, kernel_size=ksz, stride=1, padding=pad,
                              activation="tanh", pad_type="reflect")
    np.testing.assert_allclose(np.asarray(y2), np.asarray(y2_ref), rtol=1e-2, atol=1e-2)

    # 3) stride=2 path (handled at im2col time) + LeakyReLU (f32).
    y3 = conv2d_block(x, weight, bias, kernel_size=ksz, stride=2, padding=pad,
                      activation="lrelu", pad_type="zero", compute_dtype=jnp.float32)
    y3 = jax.block_until_ready(y3)
    assert y3.shape == (B, Cout, H // 2, W // 2), y3.shape
    y3_ref = conv2d_block_ref(x, weight, bias, kernel_size=ksz, stride=2, padding=pad,
                              activation="lrelu", pad_type="zero")
    np.testing.assert_allclose(np.asarray(y3), np.asarray(y3_ref), rtol=1e-2, atol=1e-2)

    # 4) Default bf16 MXU operands (f32 accumulation + f32 epilogue), wider tolerance.
    y4 = conv2d_block(x, weight, bias, kernel_size=ksz, stride=1, padding=pad,
                      activation="relu", pad_type="zero")
    y4 = jax.block_until_ready(y4)
    np.testing.assert_allclose(np.asarray(y4), np.asarray(y_ref), rtol=1e-1, atol=1e-1)

    print("KERNEL_OK")
</pallas_src>

<mosaic_0001>
module attributes {stable_mosaic.version = 11 : i64} {
  func.func @_matmul_bias_act_kernel(%arg0: i32, %arg1: i32, %arg2: i32, %arg3: memref<256x128xf32, #tpu.memory_space<vmem>>, %arg4: memref<128x128xf32, #tpu.memory_space<vmem>>, %arg5: memref<1x128xf32, #tpu.memory_space<vmem>>, %arg6: memref<256x128xf32, #tpu.memory_space<vmem>>, %arg7: memref<256x128xf32, #tpu.memory_space<vmem>>) attributes {dimension_semantics = [#tpu.dimension_semantics<parallel>, #tpu.dimension_semantics<parallel>, #tpu.dimension_semantics<arbitrary>], iteration_bounds = array<i64: 2, 1, 1>, scalar_prefetch = 0 : i64, scratch_operands = 1 : i64, tpu.core_type = #tpu.core_type<tc>, window_params = [{transform_indices = @transform_0, window_bounds = array<i64: 256, 128>}, {transform_indices = @transform_1, window_bounds = array<i64: 128, 128>}, {transform_indices = @transform_2, window_bounds = array<i64: 1, 128>}, {transform_indices = @transform_3, window_bounds = array<i64: 256, 128>}]} {
    %c0_i32 = arith.constant 0 : i32
    %0 = arith.cmpi eq, %arg2, %c0_i32 : i32
    %1 = arith.extui %0 : i1 to i32
    %c0_i32_0 = arith.constant 0 : i32
    %2 = arith.cmpi ne, %1, %c0_i32_0 : i32
    scf.if %2 {
      %cst_10 = arith.constant 0.000000e+00 : f32
      %12 = vector.broadcast %cst_10 : f32 to vector<256x128xf32>
      %c0_11 = arith.constant 0 : index
      %c0_12 = arith.constant 0 : index
      %13 = vector.load %arg7[%c0_11, %c0_12] : memref<256x128xf32, #tpu.memory_space<vmem>>, vector<256x128xf32>
      tpu.vector_store %arg7[%c0_11, %c0_12], %12 {strides = array<i32>} : memref<256x128xf32, #tpu.memory_space<vmem>>, vector<256x128xf32>,
    } else {
    }
    %c0 = arith.constant 0 : index
    %c0_1 = arith.constant 0 : index
    %3 = vector.load %arg7[%c0, %c0_1] : memref<256x128xf32, #tpu.memory_space<vmem>>, vector<256x128xf32>
    %c0_2 = arith.constant 0 : index
    %c0_3 = arith.constant 0 : index
    %4 = vector.load %arg3[%c0_2, %c0_3] : memref<256x128xf32, #tpu.memory_space<vmem>>, vector<256x128xf32>
    %c0_4 = arith.constant 0 : index
    %c0_5 = arith.constant 0 : index
    %5 = vector.load %arg4[%c0_4, %c0_5] : memref<128x128xf32, #tpu.memory_space<vmem>>, vector<128x128xf32>
    %cst = arith.constant dense<0.000000e+00> : vector<256x128xf32>
    %6 = tpu.matmul %4, %5, %cst {dimension_numbers = #tpu.dot_dimension_numbers<[1], [0], [0], [1], [0, 0, 1, 1], [], []>} : vector<256x128xf32>, vector<128x128xf32>, vector<256x128xf32> -> vector<256x128xf32>
    %7 = arith.addf %3, %6 : vector<256x128xf32>
    %c0_6 = arith.constant 0 : index
    %c0_7 = arith.constant 0 : index
    %8 = vector.load %arg7[%c0_6, %c0_7] : memref<256x128xf32, #tpu.memory_space<vmem>>, vector<256x128xf32>
    tpu.vector_store %arg7[%c0_6, %c0_7], %7 {strides = array<i32>} : memref<256x128xf32, #tpu.memory_space<vmem>>, vector<256x128xf32>,
    %c0_i32_8 = arith.constant 0 : i32
    %9 = arith.cmpi eq, %arg2, %c0_i32_8 : i32
    %10 = arith.extui %9 : i1 to i32
    %c0_i32_9 = arith.constant 0 : i32
    %11 = arith.cmpi ne, %10, %c0_i32_9 : i32
    scf.if %11 {
      %c0_10 = arith.constant 0 : index
      %c0_11 = arith.constant 0 : index
      %12 = vector.load %arg7[%c0_10, %c0_11] : memref<256x128xf32, #tpu.memory_space<vmem>>, vector<256x128xf32>
      %c0_12 = arith.constant 0 : index
      %c0_13 = arith.constant 0 : index
      %13 = vector.load %arg5[%c0_12, %c0_13] : memref<1x128xf32, #tpu.memory_space<vmem>>, vector<1x128xf32>
      %14 = vector.broadcast %13 : vector<1x128xf32> to vector<256x128xf32>
      %15 = arith.addf %12, %14 : vector<256x128xf32>
      %cst_14 = arith.constant 0.000000e+00 : f32
      %16 = vector.broadcast %cst_14 : f32 to vector<256x128xf32>
      %17 = arith.maximumf %15, %16 : vector<256x128xf32>
      %c0_15 = arith.constant 0 : index
      %c0_16 = arith.constant 0 : index
      %18 = vector.load %arg6[%c0_15, %c0_16] : memref<256x128xf32, #tpu.memory_space<vmem>>, vector<256x128xf32>
      tpu.vector_store %arg6[%c0_15, %c0_16], %17 {strides = array<i32>} : memref<256x128xf32, #tpu.memory_space<vmem>>, vector<256x128xf32>,
    } else {
    }
    return
  }
  func.func @transform_0(%arg0: i32, %arg1: i32, %arg2: i32) -> (i32, i32) {
    %c0_i32 = arith.constant 0 : i32
    return %arg0, %arg2 : i32, i32
  }
  func.func @transform_1(%arg0: i32, %arg1: i32, %arg2: i32) -> (i32, i32) {
    %c0_i32 = arith.constant 0 : i32
    return %arg2, %arg1 : i32, i32
  }
  func.func @transform_2(%arg0: i32, %arg1: i32, %arg2: i32) -> (i32, i32) {
    %c0_i32 = arith.constant 0 : i32
    %c0_i32_0 = arith.constant 0 : i32
    return %c0_i32, %arg1 : i32, i32
  }
  func.func @transform_3(%arg0: i32, %arg1: i32, %arg2: i32) -> (i32, i32) {
    %c0_i32 = arith.constant 0 : i32
    return %arg0, %arg1 : i32, i32
  }
}

</mosaic_0001>

<llo_original>
// kernel: tpu_custom_call.1
$region0: #{tpu_custom_call.1}
  #allocation0 [shape = 'u32[]', space=smem, size = 0x4, offset = 0x4, fixed_abs, tag = 'smem constant byte address 0x4 - core index']
  #allocation1 [shape = 'u32[72,128]{1,0:T(1,128)}', space=vmem, size = 0x9000, scoped, tag = 'internal scratch']
  #allocation2 [shape = 'f32[256,128]{1,0:T(8,128)}', space=vmem, size = 0x20000, scoped, tag = 'scratch operand']
  %s0 = inlined_call_operand.hbm [shape: f32[512,128], index: 0, kind: input, shape index: {}]
  %s1 = inlined_call_operand.hbm [shape: f32[128,128], index: 1, kind: input, shape index: {}]
  %s2 = inlined_call_operand.vmem [shape: f32[1,128], index: 2, kind: input, shape index: {}]
  %s3 = inlined_call_operand.hbm [shape: f32[512,128], index: 3, kind: output, shape index: {}]
  %s4 = sld [smem:[#allocation0]]
  $region61: #{tpu_custom_call.1} parent=0
    _
  %s6 = ssub.s32 1, %s4
  %s7 = scalar_select 0, %s6, %s4
  $region1: #{tpu_custom_call.1} parent=0
    #allocation3 [shape = 'u8[262144]{0}', space=vmem, size = 0x40000, scoped, tag = 'input window, operand 0']
    #allocation4 [shape = 's32[2]{0}', space=sflag, size = 0x8, scoped, tag = 'scoped memory for tpu_custom_call.1']
    #allocation5 [shape = 's32[2]{0}', space=sflag, size = 0x8, scoped, tag = 'scoped memory for tpu_custom_call.1']
    #allocation6 [shape = 'u8[65536]{0}', space=vmem, size = 0x10000, scoped, tag = 'input window, operand 1, single buffered']
    #allocation7 [shape = 's32[1]{0}', space=sflag, size = 0x4, scoped, tag = 'scoped memory for tpu_custom_call.1']
    #allocation8 [shape = 'u8[262144]{0}', space=vmem, size = 0x40000, scoped, tag = 'output window, operand 0']
    %8 = vsyncpa [#allocation4], 0
    %s9 = scalar_lea.sflag [#allocation4], 1
    %10 = vsyncpa %s9, 0
    %11 = vsyncpa [#allocation7], 0
    %12 = vsyncpa [#allocation5], 0
    %s13 = scalar_lea.sflag [#allocation5], 1
    %14 = vsyncpa %s13, 0
    loop: start=0, step=1, limit=4
    $region2: #{tpu_custom_call.1} parent=1 // loop_pre_header
      _
    $region3: #{tpu_custom_call.1} parent=1 // loop_header
      %s16 = sphi 0, %s20
      %p17 = scmp.ge.s32.totalorder %s16, 4
      %s23 = sphi 0, %s42
      %s24 = sphi 0, %s38
      %s25 = sphi 0, %s34
      %s26 = sphi 0, %s23
      %s27 = sphi 0, %s24
      %s28 = sphi 0, %s25
      %s29 = sphi 0, %s26
      %s30 = sphi 0, %s27
      %s31 = sphi 0, %s28
      %s47 = sphi 0, %s49
      %s50 = sphi 0, %s47
      %s51 = sphi 0, %s50
      %s67 = sphi 0, %s51
      %s75 = sphi 0, %s77
      %s78 = sphi 0, %s75
      %s79 = sphi 0, %s78
      %s95 = sphi 0, %s79
      %s101 = sphi 0, %s103
      %s104 = sphi 0, %s101
      %s105 = sphi 0, %s104
      %s121 = sphi 0, %s105
      %s129 = sphi 0, %s131
      %s132 = sphi 0, %s129
      %s133 = sphi 0, %s132
      %s149 = sphi 0, %s133
    $region4: #{tpu_custom_call.1} parent=1 // loop_header_branch
      %19 = sbr.rel (%p17) target = $region8
    $region5: #{tpu_custom_call.1} parent=1 // loop_body
      %s21 = ssub.s32 %s16, 1
      %s22 = ssub.s32 %s16, 2
      %s32 = sadd.s32 1, %s25
      %p33 = scmp.ge.s32.totalorder %s32, 1
      %s34 = scalar_select %p33, 0, %s32
      %s35 = sadd.s32 1, %s24
      %s36 = scalar_select %p33, %s35, %s24
      %p37 = scmp.ge.s32.totalorder %s36, 1
      %s38 = scalar_select %p37, 0, %s36
      %s39 = sadd.s32 1, %s23
      %s40 = scalar_select %p37, %s39, %s23
      %p41 = scmp.ge.s32.totalorder %s40, 2
      %s42 = scalar_select %p41, 0, %s40
      %s43 = ssub.s32 %s23, %s42
      %s44 = ssub.s32 %s25, %s34
      %s45 = sor.u32 %s43, %s44
      %p46 = scmp.eq.s32.totalorder %s45, 0
      %s48 = sadd.s32 %s47, 1
      %s49 = scalar_select %p46, %s47, %s48
      %p52 = pneg %p46
      %p53 = scmp.eq.s32.totalorder %s16, 1
      %p54 = por %p52, %p53
      %p55 = scmp.ne.s32.totalorder %s47, %s50
      %p56 = scmp.eq.s32.totalorder %s16, 0
      %p57 = por %p55, %p56
      %p58 = scmp.ne.s32.totalorder %s47, %s50
      %p59 = scmp.eq.s32.totalorder %s21, 1
      %p60 = por %p58, %p59
      %p61 = scmp.ne.s32.totalorder %s50, %s51
      %p62 = scmp.eq.s32.totalorder %s21, 0
      %p63 = por %p61, %p62
      %p64 = scmp.ne.s32.totalorder %s50, %s51
      %p65 = scmp.eq.s32.totalorder %s22, 1
      %p66 = por %p64, %p65
      %p68 = scmp.ne.s32.totalorder %s51, %s67
      %p69 = scmp.eq.s32.totalorder %s22, 0
      %p70 = por %p68, %p69
      %s71 = ssub.s32 %s25, %s34
      %s72 = ssub.s32 %s24, %s38
      %s73 = sor.u32 %s71, %s72
      %p74 = scmp.eq.s32.totalorder %s73, 0
      %s76 = sadd.s32 %s75, 1
      %s77 = scalar_select %p74, %s75, %s76
      %p80 = pneg %p74
      %p81 = scmp.eq.s32.totalorder %s16, 1
      %p82 = por %p80, %p81
      %p83 = scmp.ne.s32.totalorder %s75, %s78
      %p84 = scmp.eq.s32.totalorder %s16, 0
      %p85 = por %p83, %p84
      %p86 = scmp.ne.s32.totalorder %s75, %s78
      %p87 = scmp.eq.s32.totalorder %s21, 1
      %p88 = por %p86, %p87
      %p89 = scmp.ne.s32.totalorder %s78, %s79
      %p90 = scmp.eq.s32.totalorder %s21, 0
      %p91 = por %p89, %p90
      %p92 = scmp.ne.s32.totalorder %s78, %s79
      %p93 = scmp.eq.s32.totalorder %s22, 1
      %p94 = por %p92, %p93
      %p96 = scmp.ne.s32.totalorder %s79, %s95
      %p97 = scmp.eq.s32.totalorder %s22, 0
      %p98 = por %p96, %p97
      %s99 = ssub.s32 %s24, %s38
      %p100 = scmp.eq.s32.totalorder %s99, 0
      %s102 = sadd.s32 %s101, 1
      %s103 = scalar_select %p100, %s101, %s102
      %p106 = pneg %p100
      %p107 = scmp.eq.s32.totalorder %s16, 1
      %p108 = por %p106, %p107
      %p109 = scmp.ne.s32.totalorder %s101, %s104
      %p110 = scmp.eq.s32.totalorder %s16, 0
      %p111 = por %p109, %p110
      %p112 = scmp.ne.s32.totalorder %s101, %s104
      %p113 = scmp.eq.s32.totalorder %s21, 1
      %p114 = por %p112, %p113
      %p115 = scmp.ne.s32.totalorder %s104, %s105
      %p116 = scmp.eq.s32.totalorder %s21, 0
      %p117 = por %p115, %p116
      %p118 = scmp.ne.s32.totalorder %s104, %s105
      %p119 = scmp.eq.s32.totalorder %s22, 1
      %p120 = por %p118, %p119
      %p122 = scmp.ne.s32.totalorder %s105, %s121
      %p123 = scmp.eq.s32.totalorder %s22, 0
      %p124 = por %p122, %p123
      %s125 = ssub.s32 %s23, %s42
      %s126 = ssub.s32 %s24, %s38
      %s127 = sor.u32 %s125, %s126
      %p128 = scmp.eq.s32.totalorder %s127, 0
      %s130 = sadd.s32 %s129, 1
      %s131 = scalar_select %p128, %s129, %s130
      %p134 = pneg %p128
      %p135 = scmp.eq.s32.totalorder %s16, 1
      %p136 = por %p134, %p135
      %p137 = scmp.ne.s32.totalorder %s129, %s132
      %p138 = scmp.eq.s32.totalorder %s16, 0
      %p139 = por %p137, %p138
      %p140 = scmp.ne.s32.totalorder %s129, %s132
      %p141 = scmp.eq.s32.totalorder %s21, 1
      %p142 = por %p140, %p141
      %p143 = scmp.ne.s32.totalorder %s132, %s133
      %p144 = scmp.eq.s32.totalorder %s21, 0
      %p145 = por %p143, %p144
      %p146 = scmp.ne.s32.totalorder %s132, %s133
      %p147 = scmp.eq.s32.totalorder %s22, 1
      %p148 = por %p146, %p147
      %p150 = scmp.ne.s32.totalorder %s133, %s149
      %p151 = scmp.eq.s32.totalorder %s22, 0
      %p152 = por %p150, %p151
      %p153 = scmp.le.s32.totalorder 1, %s16
      %p154 = scmp.lt.s32.totalorder %s16, 3
      %p155 = pnand %p153, %p154
      %p156 = pneg %p155
      // Predicated region
      $region9: #{tpu_custom_call.1} parent=5 // pred_check
        _
      $region10: #{tpu_custom_call.1} parent=5 // pred_check_branch
        %158 = sbr.rel (%p155) target = $region12
      $region11: #{tpu_custom_call.1} parent=5 // pred_region
        %s159 = ssub.s32 %s16, 1
        // Predicated region
        $region13: #{tpu_custom_call.1} parent=11 // pred_check
          %p160 = pneg %p91
        $region14: #{tpu_custom_call.1} parent=11 // pred_check_branch
          %162 = sbr.rel (%p160) target = $region16
        $region15: #{tpu_custom_call.1} parent=11 // pred_region
          %s163 = smul.u32 16, %s28
          %165 = vsyncadd [#allocation7], 0
          %s166 = sadd.s32 %s27, %s163
          %s167 = smul.addr %s166, 8
          %s168 = scalar_lea.hbm %s1, %s167
          %s169 = sshll.u32 %s168, 4
          %s170 = int_to_ptr.hbm [resolvable:$true] %s169
          %s171 = sshll.u32 [#allocation6], 4
          %s172 = int_to_ptr.vmem [resolvable:$true] %s171
          %177 = dma.hbm_to_vmem [thread:$0]  %s170, 2048, %s172, [#allocation7], 128, 128, 8
        $region16: #{tpu_custom_call.1} parent=11 // pred_fallthru
          _
        // Predicated region
        $region17: #{tpu_custom_call.1} parent=11 // pred_check
          %p178 = pneg %p117
        $region18: #{tpu_custom_call.1} parent=11 // pred_check_branch
          %180 = sbr.rel (%p178) target = $region20
        $region19: #{tpu_custom_call.1} parent=11 // pred_region
          %p181 = scmp.lt.s32.totalorder %s27, 0
          %s182 = scalar_select %p181, %s27, 0
          %s183 = scalar_lea.vmem %s2, %s182
        $region20: #{tpu_custom_call.1} parent=11 // pred_fallthru
          _
      $region12: #{tpu_custom_call.1} parent=5 // pred_fallthru
        _
      %p184 = scmp.lt.s32.totalorder %s16, 2
      // Predicated region
      $region21: #{tpu_custom_call.1} parent=5 // pred_check
        %p185 = pneg %p184
      $region22: #{tpu_custom_call.1} parent=5 // pred_check_branch
        %187 = sbr.rel (%p185) target = $region24
      $region23: #{tpu_custom_call.1} parent=5 // pred_region
        // Predicated region
        $region25: #{tpu_custom_call.1} parent=23 // pred_check
          %p188 = pneg %p57
        $region26: #{tpu_custom_call.1} parent=23 // pred_check_branch
          %190 = sbr.rel (%p188) target = $region28
        $region27: #{tpu_custom_call.1} parent=23 // pred_region
          %s191 = sand.u32 %s47, 1
          %s192 = scalar_lea.sflag [#allocation4], %s191
          %s193 = sand.u32 %s47, 1
          %s194 = smul.addr %s193, 256
          %s195 = scalar_lea.vmem [#allocation3], %s194
          %s196 = smul.u32 32, %s23
          %198 = vsyncadd %s192, 0
          %s199 = sadd.s32 %s25, %s196
          %s200 = smul.addr %s199, 8
          %s201 = scalar_lea.hbm %s0, %s200
          %s202 = sshll.u32 %s201, 4
          %s203 = int_to_ptr.hbm [resolvable:$true] %s202
          %s204 = sshll.u32 %s195, 4
          %s205 = int_to_ptr.vmem [resolvable:$true] %s204
          %210 = dma.hbm_to_vmem [thread:$0]  %s203, 4096, %s205, %s192, 128, 128, 8
        $region28: #{tpu_custom_call.1} parent=23 // pred_fallthru
          _
      $region24: #{tpu_custom_call.1} parent=5 // pred_fallthru
        _
      %p211 = scmp.le.s32.totalorder 1, %s16
      %p212 = scmp.lt.s32.totalorder %s16, 3
      %p213 = pnand %p211, %p212
      %p214 = pneg %p213
      // Predicated region
      $region29: #{tpu_custom_call.1} parent=5 // pred_check
        _
      $region30: #{tpu_custom_call.1} parent=5 // pred_check_branch
        %216 = sbr.rel (%p213) target = $region32
      $region31: #{tpu_custom_call.1} parent=5 // pred_region
        %s217 = ssub.s32 %s16, 1
        %s218 = sand.u32 %s50, 1
        %s219 = scalar_lea.sflag [#allocation4], %s218
        %s220 = sand.u32 %s50, 1
        %s221 = smul.addr %s220, 256
        %s222 = scalar_lea.vmem [#allocation3], %s221
        // Predicated region
        $region33: #{tpu_custom_call.1} parent=31 // pred_check
          %p223 = pneg %p63
        $region34: #{tpu_custom_call.1} parent=31 // pred_check_branch
          %225 = sbr.rel (%p223) target = $region36
        $region35: #{tpu_custom_call.1} parent=31 // pred_region
          %227 = dma.done %s219, 4096
        $region36: #{tpu_custom_call.1} parent=31 // pred_fallthru
          _
        // Predicated region
        $region37: #{tpu_custom_call.1} parent=31 // pred_check
          %p228 = pneg %p91
        $region38: #{tpu_custom_call.1} parent=31 // pred_check_branch
          %230 = sbr.rel (%p228) target = $region40
        $region39: #{tpu_custom_call.1} parent=31 // pred_region
          %232 = dma.done [#allocation7], 2048
        $region40: #{tpu_custom_call.1} parent=31 // pred_fallthru
          _
        %s233 = sand.u32 %s50, 1
        %s234 = scalar_lea.sflag [#allocation4], %s233
        %s235 = sand.u32 %s50, 1
        %s236 = smul.addr %s235, 256
        %s237 = scalar_lea.vmem [#allocation3], %s236
        %p238 = pneg %p63
        %p239 = pneg %p60
        %p240 = pneg %p91
        %p241 = pneg %p88
        %p242 = scmp.lt.s32.totalorder %s27, 0
        %s243 = scalar_select %p242, %s27, 0
        %s244 = scalar_lea.vmem %s2, %s243
        %p245 = pneg %p117
        %p246 = pneg %p114
        %p247 = pneg %p145
        %p248 = pneg %p142
        %s249 = sand.u32 %s132, 1
        %s250 = scalar_lea.sflag [#allocation5], %s249
        %s251 = sand.u32 %s132, 1
        %s252 = smul.addr %s251, 256
        %s253 = scalar_lea.vmem [#allocation8], %s252
        %s254 = smul.u32 32, %s26
        %s255 = smul.u32 16, %s28
        %p256 = scmp.lt.s32.totalorder %s27, 0
        %s257 = scalar_select %p256, %s27, 0
        %s258 = scalar_lea.vmem %s2, %s257
        %s259 = smul.u32 32, %s26
        %p260 = scmp.eq.s32.totalorder %s28, 0
        // Predicated region
        $region41: #{tpu_custom_call.1} parent=31 // pred_check
          %p261 = pneg %p260
        $region42: #{tpu_custom_call.1} parent=31 // pred_check_branch
          %263 = sbr.rel (%p261) target = $region44
        $region43: #{tpu_custom_call.1} parent=31 // pred_region
          %264 = vst [vmem:[#allocation2] sm:$0xff] 0.0
          %265 = vst [vmem:[#allocation2 + $0x8] sm:$0xff] 0.0
          %266 = vst [vmem:[#allocation2 + $0x10] sm:$0xff] 0.0
          %267 = vst [vmem:[#allocation2 + $0x18] sm:$0xff] 0.0
          %268 = vst [vmem:[#allocation2 + $0x20] sm:$0xff] 0.0
          %269 = vst [vmem:[#allocation2 + $0x28] sm:$0xff] 0.0
          %270 = vst [vmem:[#allocation2 + $0x30] sm:$0xff] 0.0
          %271 = vst [vmem:[#allocation2 + $0x38] sm:$0xff] 0.0
          %272 = vst [vmem:[#allocation2 + $0x40] sm:$0xff] 0.0
          %273 = vst [vmem:[#allocation2 + $0x48] sm:$0xff] 0.0
          %274 = vst [vmem:[#allocation2 + $0x50] sm:$0xff] 0.0
          %275 = vst [vmem:[#allocation2 + $0x58] sm:$0xff] 0.0
          %276 = vst [vmem:[#allocation2 + $0x60] sm:$0xff] 0.0
          %277 = vst [vmem:[#allocation2 + $0x68] sm:$0xff] 0.0
          %278 = vst [vmem:[#allocation2 + $0x70] sm:$0xff] 0.0
          %279 = vst [vmem:[#allocation2 + $0x78] sm:$0xff] 0.0
          %280 = vst [vmem:[#allocation2 + $0x80] sm:$0xff] 0.0
          %281 = vst [vmem:[#allocation2 + $0x88] sm:$0xff] 0.0
          %282 = vst [vmem:[#allocation2 + $0x90] sm:$0xff] 0.0
          %283 = vst [vmem:[#allocation2 + $0x98] sm:$0xff] 0.0
          %284 = vst [vmem:[#allocation2 + $0xa0] sm:$0xff] 0.0
          %285 = vst [vmem:[#allocation2 + $0xa8] sm:$0xff] 0.0
          %286 = vst [vmem:[#allocation2 + $0xb0] sm:$0xff] 0.0
          %287 = vst [vmem:[#allocation2 + $0xb8] sm:$0xff] 0.0
          %288 = vst [vmem:[#allocation2 + $0xc0] sm:$0xff] 0.0
          %289 = vst [vmem:[#allocation2 + $0xc8] sm:$0xff] 0.0
          %290 = vst [vmem:[#allocation2 + $0xd0] sm:$0xff] 0.0
          %291 = vst [vmem:[#allocation2 + $0xd8] sm:$0xff] 0.0
          %292 = vst [vmem:[#allocation2 + $0xe0] sm:$0xff] 0.0
          %293 = vst [vmem:[#allocation2 + $0xe8] sm:$0xff] 0.0
          %294 = vst [vmem:[#allocation2 + $0xf0] sm:$0xff] 0.0
          %295 = vst [vmem:[#allocation2 + $0xf8] sm:$0xff] 0.0
        $region44: #{tpu_custom_call.1} parent=31 // pred_fallthru
          _
        %v296 = vld [vmem:[#allocation2] sm:$0xff]
        %v297 = vld [vmem:[#allocation2 + $0x8] sm:$0xff]
        %v298 = vld [vmem:[#allocation2 + $0x10] sm:$0xff]
        %v299 = vld [vmem:[#allocation2 + $0x18] sm:$0xff]
        %v300 = vld [vmem:[#allocation2 + $0x20] sm:$0xff]
        %v301 = vld [vmem:[#allocation2 + $0x28] sm:$0xff]
        %v302 = vld [vmem:[#allocation2 + $0x30] sm:$0xff]
        %v303 = vld [vmem:[#allocation2 + $0x38] sm:$0xff]
        %v304 = vld [vmem:[#allocation2 + $0x40] sm:$0xff]
        %v305 = vld [vmem:[#allocation2 + $0x48] sm:$0xff]
        %v306 = vld [vmem:[#allocation2 + $0x50] sm:$0xff]
        %v307 = vld [vmem:[#allocation2 + $0x58] sm:$0xff]
        %v308 = vld [vmem:[#allocation2 + $0x60] sm:$0xff]
        %v309 = vld [vmem:[#allocation2 + $0x68] sm:$0xff]
        %v310 = vld [vmem:[#allocation2 + $0x70] sm:$0xff]
        %v311 = vld [vmem:[#allocation2 + $0x78] sm:$0xff]
        %v312 = vld [vmem:[#allocation2 + $0x80] sm:$0xff]
        %v313 = vld [vmem:[#allocation2 + $0x88] sm:$0xff]
        %v314 = vld [vmem:[#allocation2 + $0x90] sm:$0xff]
        %v315 = vld [vmem:[#allocation2 + $0x98] sm:$0xff]
        %v316 = vld [vmem:[#allocation2 + $0xa0] sm:$0xff]
        %v317 = vld [vmem:[#allocation2 + $0xa8] sm:$0xff]
        %v318 = vld [vmem:[#allocation2 + $0xb0] sm:$0xff]
        %v319 = vld [vmem:[#allocation2 + $0xb8] sm:$0xff]
        %v320 = vld [vmem:[#allocation2 + $0xc0] sm:$0xff]
        %v321 = vld [vmem:[#allocation2 + $0xc8] sm:$0xff]
        %v322 = vld [vmem:[#allocation2 + $0xd0] sm:$0xff]
        %v323 = vld [vmem:[#allocation2 + $0xd8] sm:$0xff]
        %v324 = vld [vmem:[#allocation2 + $0xe0] sm:$0xff]
        %v325 = vld [vmem:[#allocation2 + $0xe8] sm:$0xff]
        %v326 = vld [vmem:[#allocation2 + $0xf0] sm:$0xff]
        %v327 = vld [vmem:[#allocation2 + $0xf8] sm:$0xff]
        %v328 = vld [vmem:[%s222] sm:$0xff]
        %v329 = vld [vmem:[%s222 + $0x8] sm:$0xff]
        %v330 = vld [vmem:[%s222 + $0x10] sm:$0xff]
        %v331 = vld [vmem:[%s222 + $0x18] sm:$0xff]
        %v332 = vld [vmem:[%s222 + $0x20] sm:$0xff]
        %v333 = vld [vmem:[%s222 + $0x28] sm:$0xff]
        %v334 = vld [vmem:[%s222 + $0x30] sm:$0xff]
        %v335 = vld [vmem:[%s222 + $0x38] sm:$0xff]
        %v336 = vld [vmem:[%s222 + $0x40] sm:$0xff]
        %v337 = vld [vmem:[%s222 + $0x48] sm:$0xff]
        %v338 = vld [vmem:[%s222 + $0x50] sm:$0xff]
        %v339 = vld [vmem:[%s222 + $0x58] sm:$0xff]
        %v340 = vld [vmem:[%s222 + $0x60] sm:$0xff]
        %v341 = vld [vmem:[%s222 + $0x68] sm:$0xff]
        %v342 = vld [vmem:[%s222 + $0x70] sm:$0xff]
        %v343 = vld [vmem:[%s222 + $0x78] sm:$0xff]
        %v344 = vld [vmem:[%s222 + $0x80] sm:$0xff]
        %v345 = vld [vmem:[%s222 + $0x88] sm:$0xff]
        %v346 = vld [vmem:[%s222 + $0x90] sm:$0xff]
        %v347 = vld [vmem:[%s222 + $0x98] sm:$0xff]
        %v348 = vld [vmem:[%s222 + $0xa0] sm:$0xff]
        %v349 = vld [vmem:[%s222 + $0xa8] sm:$0xff]
        %v350 = vld [vmem:[%s222 + $0xb0] sm:$0xff]
        %v351 = vld [vmem:[%s222 + $0xb8] sm:$0xff]
        %v352 = vld [vmem:[%s222 + $0xc0] sm:$0xff]
        %v353 = vld [vmem:[%s222 + $0xc8] sm:$0xff]
        %v354 = vld [vmem:[%s222 + $0xd0] sm:$0xff]
        %v355 = vld [vmem:[%s222 + $0xd8] sm:$0xff]
        %v356 = vld [vmem:[%s222 + $0xe0] sm:$0xff]
        %v357 = vld [vmem:[%s222 + $0xe8] sm:$0xff]
        %v358 = vld [vmem:[%s222 + $0xf0] sm:$0xff]
        %v359 = vld [vmem:[%s222 + $0xf8] sm:$0xff]
        %v360 = vld [vmem:[#allocation6] sm:$0xff]
        %v361 = vld [vmem:[#allocation6 + $0x8] sm:$0xff]
        %v362 = vld [vmem:[#allocation6 + $0x10] sm:$0xff]
        %v363 = vld [vmem:[#allocation6 + $0x18] sm:$0xff]
        %v364 = vld [vmem:[#allocation6 + $0x20] sm:$0xff]
        %v365 = vld [vmem:[#allocation6 + $0x28] sm:$0xff]
        %v366 = vld [vmem:[#allocation6 + $0x30] sm:$0xff]
        %v367 = vld [vmem:[#allocation6 + $0x38] sm:$0xff]
        %v368 = vld [vmem:[#allocation6 + $0x40] sm:$0xff]
        %v369 = vld [vmem:[#allocation6 + $0x48] sm:$0xff]
        %v370 = vld [vmem:[#allocation6 + $0x50] sm:$0xff]
        %v371 = vld [vmem:[#allocation6 + $0x58] sm:$0xff]
        %v372 = vld [vmem:[#allocation6 + $0x60] sm:$0xff]
        %v373 = vld [vmem:[#allocation6 + $0x68] sm:$0xff]
        %v374 = vld [vmem:[#allocation6 + $0x70] sm:$0xff]
        %v375 = vld [vmem:[#allocation6 + $0x78] sm:$0xff]
        %376 = vmatpush.msra.mxu0 %v375
        %377 = vmatpush.msra.mxu0 %v374
        %378 = vmatpush.msra.mxu0 %v373
        %379 = vmatpush.msra.mxu0 %v372
        %380 = vmatpush.msra.mxu0 %v371
        %381 = vmatpush.msra.mxu0 %v370
        %382 = vmatpush.msra.mxu0 %v369
        %383 = vmatpush.msra.mxu0 %v368
        %384 = vmatpush.msra.mxu0 %v367
        %385 = vmatpush.msra.mxu0 %v366
        %386 = vmatpush.msra.mxu0 %v365
        %387 = vmatpush.msra.mxu0 %v364
        %388 = vmatpush.msra.mxu0 %v363
        %389 = vmatpush.msra.mxu0 %v362
        %390 = vmatpush.msra.mxu0 %v361
        %391 = vmatpush.msra.mxu0 %v360
        %392 = vmatmul.f32.gmra.mxu0 %v328
        %v393 = vpop.f32.mrf.mxu0
        %v394 = vadd.f32 0.0, %v393
        %395 = vmatmul.f32.gmra.mxu0 %v329
        %v396 = vpop.f32.mrf.mxu0
        %v397 = vadd.f32 0.0, %v396
        %398 = vmatmul.f32.gmra.mxu0 %v330
        %v399 = vpop.f32.mrf.mxu0
        %v400 = vadd.f32 0.0, %v399
        %401 = vmatmul.f32.gmra.mxu0 %v331
        %v402 = vpop.f32.mrf.mxu0
        %v403 = vadd.f32 0.0, %v402
        %404 = vmatmul.f32.gmra.mxu0 %v332
        %v405 = vpop.f32.mrf.mxu0
        %v406 = vadd.f32 0.0, %v405
        %407 = vmatmul.f32.gmra.mxu0 %v333
        %v408 = vpop.f32.mrf.mxu0
        %v409 = vadd.f32 0.0, %v408
        %410 = vmatmul.f32.gmra.mxu0 %v334
        %v411 = vpop.f32.mrf.mxu0
        %v412 = vadd.f32 0.0, %v411
        %413 = vmatmul.f32.gmra.mxu0 %v335
        %v414 = vpop.f32.mrf.mxu0
        %v415 = vadd.f32 0.0, %v414
        %416 = vmatmul.f32.gmra.mxu0 %v336
        %v417 = vpop.f32.mrf.mxu0
        %v418 = vadd.f32 0.0, %v417
        %419 = vmatmul.f32.gmra.mxu0 %v337
        %v420 = vpop.f32.mrf.mxu0
        %v421 = vadd.f32 0.0, %v420
        %422 = vmatmul.f32.gmra.mxu0 %v338
        %v423 = vpop.f32.mrf.mxu0
        %v424 = vadd.f32 0.0, %v423
        %425 = vmatmul.f32.gmra.mxu0 %v339
        %v426 = vpop.f32.mrf.mxu0
        %v427 = vadd.f32 0.0, %v426
        %428 = vmatmul.f32.gmra.mxu0 %v340
        %v429 = vpop.f32.mrf.mxu0
        %v430 = vadd.f32 0.0, %v429
        %431 = vmatmul.f32.gmra.mxu0 %v341
        %v432 = vpop.f32.mrf.mxu0
        %v433 = vadd.f32 0.0, %v432
        %434 = vmatmul.f32.gmra.mxu0 %v342
        %v435 = vpop.f32.mrf.mxu0
        %v436 = vadd.f32 0.0, %v435
        %437 = vmatmul.f32.gmra.mxu0 %v343
        %v438 = vpop.f32.mrf.mxu0
        %v439 = vadd.f32 0.0, %v438
        %440 = vmatmul.f32.gmra.mxu0 %v344
        %v441 = vpop.f32.mrf.mxu0
        %v442 = vadd.f32 0.0, %v441
        %443 = vmatmul.f32.gmra.mxu0 %v345
        %v444 = vpop.f32.mrf.mxu0
        %v445 = vadd.f32 0.0, %v444
        %446 = vmatmul.f32.gmra.mxu0 %v346
        %v447 = vpop.f32.mrf.mxu0
        %v448 = vadd.f32 0.0, %v447
        %449 = vmatmul.f32.gmra.mxu0 %v347
        %v450 = vpop.f32.mrf.mxu0
        %v451 = vadd.f32 0.0, %v450
        %452 = vmatmul.f32.gmra.mxu0 %v348
        %v453 = vpop.f32.mrf.mxu0
        %v454 = vadd.f32 0.0, %v453
        %455 = vmatmul.f32.gmra.mxu0 %v349
        %v456 = vpop.f32.mrf.mxu0
        %v457 = vadd.f32 0.0, %v456
        %458 = vmatmul.f32.gmra.mxu0 %v350
        %v459 = vpop.f32.mrf.mxu0
        %v460 = vadd.f32 0.0, %v459
        %461 = vmatmul.f32.gmra.mxu0 %v351
        %v462 = vpop.f32.mrf.mxu0
        %v463 = vadd.f32 0.0, %v462
        %464 = vmatmul.f32.gmra.mxu0 %v352
        %v465 = vpop.f32.mrf.mxu0
        %v466 = vadd.f32 0.0, %v465
        %467 = vmatmul.f32.gmra.mxu0 %v353
        %v468 = vpop.f32.mrf.mxu0
        %v469 = vadd.f32 0.0, %v468
        %470 = vmatmul.f32.gmra.mxu0 %v354
        %v471 = vpop.f32.mrf.mxu0
        %v472 = vadd.f32 0.0, %v471
        %473 = vmatmul.f32.gmra.mxu0 %v355
        %v474 = vpop.f32.mrf.mxu0
        %v475 = vadd.f32 0.0, %v474
        %476 = vmatmul.f32.gmra.mxu0 %v356
        %v477 = vpop.f32.mrf.mxu0
        %v478 = vadd.f32 0.0, %v477
        %479 = vmatmul.f32.gmra.mxu0 %v357
        %v480 = vpop.f32.mrf.mxu0
        %v481 = vadd.f32 0.0, %v480
        %482 = vmatmul.f32.gmra.mxu0 %v358
        %v483 = vpop.f32.mrf.mxu0
        %v484 = vadd.f32 0.0, %v483
        %485 = vmatmul.f32.gmra.mxu0 %v359
        %v486 = vpop.f32.mrf.mxu0
        %v487 = vadd.f32 0.0, %v486
        %488 = vdwg.mxu0
        %v489 = vadd.f32 %v296, %v394
        %v490 = vadd.f32 %v297, %v397
        %v491 = vadd.f32 %v298, %v400
        %v492 = vadd.f32 %v299, %v403
        %v493 = vadd.f32 %v300, %v406
        %v494 = vadd.f32 %v301, %v409
        %v495 = vadd.f32 %v302, %v412
        %v496 = vadd.f32 %v303, %v415
        %v497 = vadd.f32 %v304, %v418
        %v498 = vadd.f32 %v305, %v421
        %v499 = vadd.f32 %v306, %v424
        %v500 = vadd.f32 %v307, %v427
        %v501 = vadd.f32 %v308, %v430
        %v502 = vadd.f32 %v309, %v433
        %v503 = vadd.f32 %v310, %v436
        %v504 = vadd.f32 %v311, %v439
        %v505 = vadd.f32 %v312, %v442
        %v506 = vadd.f32 %v313, %v445
        %v507 = vadd.f32 %v314, %v448
        %v508 = vadd.f32 %v315, %v451
        %v509 = vadd.f32 %v316, %v454
        %v510 = vadd.f32 %v317, %v457
        %v511 = vadd.f32 %v318, %v460
        %v512 = vadd.f32 %v319, %v463
        %v513 = vadd.f32 %v320, %v466
        %v514 = vadd.f32 %v321, %v469
        %v515 = vadd.f32 %v322, %v472
        %v516 = vadd.f32 %v323, %v475
        %v517 = vadd.f32 %v324, %v478
        %v518 = vadd.f32 %v325, %v481
        %v519 = vadd.f32 %v326, %v484
        %v520 = vadd.f32 %v327, %v487
        %521 = vst [vmem:[#allocation2] sm:$0xff] %v489
        %522 = vst [vmem:[#allocation2 + $0x8] sm:$0xff] %v490
        %523 = vst [vmem:[#allocation2 + $0x10] sm:$0xff] %v491
        %524 = vst [vmem:[#allocation2 + $0x18] sm:$0xff] %v492
        %525 = vst [vmem:[#allocation2 + $0x20] sm:$0xff] %v493
        %526 = vst [vmem:[#allocation2 + $0x28] sm:$0xff] %v494
        %527 = vst [vmem:[#allocation2 + $0x30] sm:$0xff] %v495
        %528 = vst [vmem:[#allocation2 + $0x38] sm:$0xff] %v496
        %529 = vst [vmem:[#allocation2 + $0x40] sm:$0xff] %v497
        %530 = vst [vmem:[#allocation2 + $0x48] sm:$0xff] %v498
        %531 = vst [vmem:[#allocation2 + $0x50] sm:$0xff] %v499
        %532 = vst [vmem:[#allocation2 + $0x58] sm:$0xff] %v500
        %533 = vst [vmem:[#allocation2 + $0x60] sm:$0xff] %v501
        %534 = vst [vmem:[#allocation2 + $0x68] sm:$0xff] %v502
        %535 = vst [vmem:[#allocation2 + $0x70] sm:$0xff] %v503
        %536 = vst [vmem:[#allocation2 + $0x78] sm:$0xff] %v504
        %537 = vst [vmem:[#allocation2 + $0x80] sm:$0xff] %v505
        %538 = vst [vmem:[#allocation2 + $0x88] sm:$0xff] %v506
        %539 = vst [vmem:[#allocation2 + $0x90] sm:$0xff] %v507
        %540 = vst [vmem:[#allocation2 + $0x98] sm:$0xff] %v508
        %541 = vst [vmem:[#allocation2 + $0xa0] sm:$0xff] %v509
        %542 = vst [vmem:[#allocation2 + $0xa8] sm:$0xff] %v510
        %543 = vst [vmem:[#allocation2 + $0xb0] sm:$0xff] %v511
        %544 = vst [vmem:[#allocation2 + $0xb8] sm:$0xff] %v512
        %545 = vst [vmem:[#allocation2 + $0xc0] sm:$0xff] %v513
        %546 = vst [vmem:[#allocation2 + $0xc8] sm:$0xff] %v514
        %547 = vst [vmem:[#allocation2 + $0xd0] sm:$0xff] %v515
        %548 = vst [vmem:[#allocation2 + $0xd8] sm:$0xff] %v516
        %549 = vst [vmem:[#allocation2 + $0xe0] sm:$0xff] %v517
        %550 = vst [vmem:[#allocation2 + $0xe8] sm:$0xff] %v518
        %551 = vst [vmem:[#allocation2 + $0xf0] sm:$0xff] %v519
        %552 = vst [vmem:[#allocation2 + $0xf8] sm:$0xff] %v520
        // Predicated region
        $region45: #{tpu_custom_call.1} parent=31 // pred_check
          %p553 = pneg %p260
        $region46: #{tpu_custom_call.1} parent=31 // pred_check_branch
          %555 = sbr.rel (%p553) target = $region48
        $region47: #{tpu_custom_call.1} parent=31 // pred_region
          %v556 = vld [vmem:[#allocation2] sm:$0xff]
          %v557 = vld [vmem:[#allocation2 + $0x8] sm:$0xff]
          %v558 = vld [vmem:[#allocation2 + $0x10] sm:$0xff]
          %v559 = vld [vmem:[#allocation2 + $0x18] sm:$0xff]
          %v560 = vld [vmem:[#allocation2 + $0x20] sm:$0xff]
          %v561 = vld [vmem:[#allocation2 + $0x28] sm:$0xff]
          %v562 = vld [vmem:[#allocation2 + $0x30] sm:$0xff]
          %v563 = vld [vmem:[#allocation2 + $0x38] sm:$0xff]
          %v564 = vld [vmem:[#allocation2 + $0x40] sm:$0xff]
          %v565 = vld [vmem:[#allocation2 + $0x48] sm:$0xff]
          %v566 = vld [vmem:[#allocation2 + $0x50] sm:$0xff]
          %v567 = vld [vmem:[#allocation2 + $0x58] sm:$0xff]
          %v568 = vld [vmem:[#allocation2 + $0x60] sm:$0xff]
          %v569 = vld [vmem:[#allocation2 + $0x68] sm:$0xff]
          %v570 = vld [vmem:[#allocation2 + $0x70] sm:$0xff]
          %v571 = vld [vmem:[#allocation2 + $0x78] sm:$0xff]
          %v572 = vld [vmem:[#allocation2 + $0x80] sm:$0xff]
          %v573 = vld [vmem:[#allocation2 + $0x88] sm:$0xff]
          %v574 = vld [vmem:[#allocation2 + $0x90] sm:$0xff]
          %v575 = vld [vmem:[#allocation2 + $0x98] sm:$0xff]
          %v576 = vld [vmem:[#allocation2 + $0xa0] sm:$0xff]
          %v577 = vld [vmem:[#allocation2 + $0xa8] sm:$0xff]
          %v578 = vld [vmem:[#allocation2 + $0xb0] sm:$0xff]
          %v579 = vld [vmem:[#allocation2 + $0xb8] sm:$0xff]
          %v580 = vld [vmem:[#allocation2 + $0xc0] sm:$0xff]
          %v581 = vld [vmem:[#allocation2 + $0xc8] sm:$0xff]
          %v582 = vld [vmem:[#allocation2 + $0xd0] sm:$0xff]
          %v583 = vld [vmem:[#allocation2 + $0xd8] sm:$0xff]
          %v584 = vld [vmem:[#allocation2 + $0xe0] sm:$0xff]
          %v585 = vld [vmem:[#allocation2 + $0xe8] sm:$0xff]
          %v586 = vld [vmem:[#allocation2 + $0xf0] sm:$0xff]
          %v587 = vld [vmem:[#allocation2 + $0xf8] sm:$0xff]
          %v588 = vld [vmem:[%s258] sm:$0x1]
          %v590 = vperm.slane %v588, 0
          %v592 = vadd.f32 %v556, %v590
          %v593 = vadd.f32 %v557, %v590
          %v594 = vadd.f32 %v558, %v590
          %v595 = vadd.f32 %v559, %v590
          %v596 = vadd.f32 %v560, %v590
          %v597 = vadd.f32 %v561, %v590
          %v598 = vadd.f32 %v562, %v590
          %v599 = vadd.f32 %v563, %v590
          %v600 = vadd.f32 %v564, %v590
          %v601 = vadd.f32 %v565, %v590
          %v602 = vadd.f32 %v566, %v590
          %v603 = vadd.f32 %v567, %v590
          %v604 = vadd.f32 %v568, %v590
          %v605 = vadd.f32 %v569, %v590
          %v606 = vadd.f32 %v570, %v590
          %v607 = vadd.f32 %v571, %v590
          %v608 = vadd.f32 %v572, %v590
          %v609 = vadd.f32 %v573, %v590
          %v610 = vadd.f32 %v574, %v590
          %v611 = vadd.f32 %v575, %v590
          %v612 = vadd.f32 %v576, %v590
          %v613 = vadd.f32 %v577, %v590
          %v614 = vadd.f32 %v578, %v590
          %v615 = vadd.f32 %v579, %v590
          %v616 = vadd.f32 %v580, %v590
          %v617 = vadd.f32 %v581, %v590
          %v618 = vadd.f32 %v582, %v590
          %v619 = vadd.f32 %v583, %v590
          %v620 = vadd.f32 %v584, %v590
          %v621 = vadd.f32 %v585, %v590
          %v622 = vadd.f32 %v586, %v590
          %v623 = vadd.f32 %v587, %v590
          %v624 = vmax.f32 %v592, 0.0
          %v625 = vmax.f32 %v593, 0.0
          %v626 = vmax.f32 %v594, 0.0
          %v627 = vmax.f32 %v595, 0.0
          %v628 = vmax.f32 %v596, 0.0
          %v629 = vmax.f32 %v597, 0.0
          %v630 = vmax.f32 %v598, 0.0
          %v631 = vmax.f32 %v599, 0.0
          %v632 = vmax.f32 %v600, 0.0
          %v633 = vmax.f32 %v601, 0.0
          %v634 = vmax.f32 %v602, 0.0
          %v635 = vmax.f32 %v603, 0.0
          %v636 = vmax.f32 %v604, 0.0
          %v637 = vmax.f32 %v605, 0.0
          %v638 = vmax.f32 %v606, 0.0
          %v639 = vmax.f32 %v607, 0.0
          %v640 = vmax.f32 %v608, 0.0
          %v641 = vmax.f32 %v609, 0.0
          %v642 = vmax.f32 %v610, 0.0
          %v643 = vmax.f32 %v611, 0.0
          %v644 = vmax.f32 %v612, 0.0
          %v645 = vmax.f32 %v613, 0.0
          %v646 = vmax.f32 %v614, 0.0
          %v647 = vmax.f32 %v615, 0.0
          %v648 = vmax.f32 %v616, 0.0
          %v649 = vmax.f32 %v617, 0.0
          %v650 = vmax.f32 %v618, 0.0
          %v651 = vmax.f32 %v619, 0.0
          %v652 = vmax.f32 %v620, 0.0
          %v653 = vmax.f32 %v621, 0.0
          %v654 = vmax.f32 %v622, 0.0
          %v655 = vmax.f32 %v623, 0.0
          %656 = vst [vmem:[%s253] sm:$0xff] %v624
          %657 = vst [vmem:[%s253 + $0x8] sm:$0xff] %v625
          %658 = vst [vmem:[%s253 + $0x10] sm:$0xff] %v626
          %659 = vst [vmem:[%s253 + $0x18] sm:$0xff] %v627
          %660 = vst [vmem:[%s253 + $0x20] sm:$0xff] %v628
          %661 = vst [vmem:[%s253 + $0x28] sm:$0xff] %v629
          %662 = vst [vmem:[%s253 + $0x30] sm:$0xff] %v630
          %663 = vst [vmem:[%s253 + $0x38] sm:$0xff] %v631
          %664 = vst [vmem:[%s253 + $0x40] sm:$0xff] %v632
          %665 = vst [vmem:[%s253 + $0x48] sm:$0xff] %v633
          %666 = vst [vmem:[%s253 + $0x50] sm:$0xff] %v634
          %667 = vst [vmem:[%s253 + $0x58] sm:$0xff] %v635
          %668 = vst [vmem:[%s253 + $0x60] sm:$0xff] %v636
          %669 = vst [vmem:[%s253 + $0x68] sm:$0xff] %v637
          %670 = vst [vmem:[%s253 + $0x70] sm:$0xff] %v638
          %671 = vst [vmem:[%s253 + $0x78] sm:$0xff] %v639
          %672 = vst [vmem:[%s253 + $0x80] sm:$0xff] %v640
          %673 = vst [vmem:[%s253 + $0x88] sm:$0xff] %v641
          %674 = vst [vmem:[%s253 + $0x90] sm:$0xff] %v642
          %675 = vst [vmem:[%s253 + $0x98] sm:$0xff] %v643
          %676 = vst [vmem:[%s253 + $0xa0] sm:$0xff] %v644
          %677 = vst [vmem:[%s253 + $0xa8] sm:$0xff] %v645
          %678 = vst [vmem:[%s253 + $0xb0] sm:$0xff] %v646
          %679 = vst [vmem:[%s253 + $0xb8] sm:$0xff] %v647
          %680 = vst [vmem:[%s253 + $0xc0] sm:$0xff] %v648
          %681 = vst [vmem:[%s253 + $0xc8] sm:$0xff] %v649
          %682 = vst [vmem:[%s253 + $0xd0] sm:$0xff] %v650
          %683 = vst [vmem:[%s253 + $0xd8] sm:$0xff] %v651
          %684 = vst [vmem:[%s253 + $0xe0] sm:$0xff] %v652
          %685 = vst [vmem:[%s253 + $0xe8] sm:$0xff] %v653
          %686 = vst [vmem:[%s253 + $0xf0] sm:$0xff] %v654
          %687 = vst [vmem:[%s253 + $0xf8] sm:$0xff] %v655
        $region48: #{tpu_custom_call.1} parent=31 // pred_fallthru
          _
        %s688 = sand.u32 %s132, 1
        %s689 = scalar_lea.sflag [#allocation5], %s688
        %s690 = sand.u32 %s132, 1
        %s691 = smul.addr %s690, 256
        %s692 = scalar_lea.vmem [#allocation8], %s691
        // Predicated region
        $region49: #{tpu_custom_call.1} parent=31 // pred_check
          %p693 = pneg %p142
        $region50: #{tpu_custom_call.1} parent=31 // pred_check_branch
          %695 = sbr.rel (%p693) target = $region52
        $region51: #{tpu_custom_call.1} parent=31 // pred_region
          %s696 = smul.u32 32, %s26
          %698 = vsyncadd %s689, 0
          %s699 = sadd.s32 %s27, %s696
          %s700 = smul.addr %s699, 8
          %s701 = scalar_lea.hbm %s3, %s700
          %s702 = sshll.u32 %s692, 4
          %s703 = int_to_ptr.vmem [resolvable:$true] %s702
          %s704 = sshll.u32 %s701, 4
          %s705 = int_to_ptr.hbm [resolvable:$true] %s704
          %710 = dma.vmem_to_hbm [thread:$0]  %s703, 4096, %s705, %s689, 128, 128, 8
        $region52: #{tpu_custom_call.1} parent=31 // pred_fallthru
          _
      $region32: #{tpu_custom_call.1} parent=5 // pred_fallthru
        _
      %p711 = scmp.le.s32.totalorder 2, %s16
      // Predicated region
      $region53: #{tpu_custom_call.1} parent=5 // pred_check
        %p712 = pneg %p711
      $region54: #{tpu_custom_call.1} parent=5 // pred_check_branch
        %714 = sbr.rel (%p712) target = $region56
      $region55: #{tpu_custom_call.1} parent=5 // pred_region
        %s715 = ssub.s32 %s16, 2
        // Predicated region
        $region57: #{tpu_custom_call.1} parent=55 // pred_check
          %p716 = pneg %p148
        $region58: #{tpu_custom_call.1} parent=55 // pred_check_branch
          %718 = sbr.rel (%p716) target = $region60
        $region59: #{tpu_custom_call.1} parent=55 // pred_region
          %s719 = sand.u32 %s133, 1
          %s720 = scalar_lea.sflag [#allocation5], %s719
          %s721 = sand.u32 %s133, 1
          %s722 = smul.addr %s721, 256
          %s723 = scalar_lea.vmem [#allocation8], %s722
          %725 = dma.done %s720, 4096
        $region60: #{tpu_custom_call.1} parent=55 // pred_fallthru
          _
      $region56: #{tpu_custom_call.1} parent=5 // pred_fallthru
        _
    $region6: #{tpu_custom_call.1} parent=1 // loop_footer
      %s20 = sadd.s32 1, %s16
    $region7: #{tpu_custom_call.1} parent=1 // loop_footer_branch
      %15 = sbr.rel target = $region3
    $region8: #{tpu_custom_call.1} parent=1 // loop_exit
      _
    %726 = vsyncpa [#allocation4], 1
    %s727 = scalar_lea.sflag [#allocation4], 1
    %728 = vsyncpa %s727, 1
    %729 = vsyncpa [#allocation7], 1
    %730 = vsyncpa [#allocation5], 1
    %s731 = scalar_lea.sflag [#allocation5], 1
    %732 = vsyncpa %s731, 1

</llo_original>
